<compile_context>
chip_gen: v5e
topology: v5e:2x2
jax: 0.10.0
libtpu: 0.0.40
codegen_flags: <defaults>
</compile_context>

<pallas_src>
import math

import jax
import jax.numpy as jnp
import numpy as np
from jax.experimental import pallas as pl
from jax.experimental.pallas import tpu as pltpu


# --------------------------------------------------------------------------- #
# helpers
# --------------------------------------------------------------------------- #
def _round_up(x, m):
    return ((x + m - 1) // m) * m


def _pad_to(a, shape):
    """Zero-pad `a` up to `shape` (no copy if already that shape)."""
    if tuple(a.shape) == tuple(shape):
        return a
    pad = [(0, t - s) for s, t in zip(a.shape, shape)]
    return jnp.pad(a, pad)


def _vmem_budget_bytes():
    """Usable scoped-VMEM budget for this chip generation (review #7)."""
    try:
        cap = int(pltpu.get_tpu_info().vmem_capacity_bytes)
    except Exception:
        cap = 128 << 20  # v5e / v6e physical VMEM
    # ~20% headroom for Mosaic internal scratch:
    #   128 MiB -> ~102 MiB (v5e/v6e), 64 MiB -> ~51 MiB (v7x per TensorCore).
    return max(int(cap * 0.8), 24 << 20)


def _vmem_limit(est_bytes, budget):
    return int(min(budget, max(int(est_bytes * 1.75) + (8 << 20), 32 << 20)))


# --------------------------------------------------------------------------- #
# kernel bodies
# --------------------------------------------------------------------------- #
def _make_fused_kernel(cd, with_bias):
    """Small-graph fused kernel: out = adj @ (x @ W) [+ bias], all on-chip."""
    if with_bias:
        def kernel(x_ref, adj_ref, w_ref, b_ref, o_ref):
            support = jnp.dot(x_ref[0].astype(cd), w_ref[...],
                              preferred_element_type=jnp.float32)
            out = jnp.dot(adj_ref[...].astype(cd), support.astype(cd),
                          preferred_element_type=jnp.float32)
            out = out + b_ref[...].astype(jnp.float32)
            o_ref[0] = out.astype(o_ref.dtype)
    else:
        def kernel(x_ref, adj_ref, w_ref, o_ref):
            support = jnp.dot(x_ref[0].astype(cd), w_ref[...],
                              preferred_element_type=jnp.float32)
            out = jnp.dot(adj_ref[...].astype(cd), support.astype(cd),
                          preferred_element_type=jnp.float32)
            o_ref[0] = out.astype(o_ref.dtype)
    return kernel


def _make_p1_kernel(cd):
    """Pass 1: support tile = x tile @ W tile (f32 accumulation on the MXU)."""
    def kernel(x_ref, w_ref, s_ref):
        acc = jnp.dot(x_ref[0].astype(cd), w_ref[...],
                      preferred_element_type=jnp.float32)
        s_ref[0] = acc.astype(s_ref.dtype)
    return kernel


def _make_p2_kernel(cd, with_bias):
    """Pass 2: out row tile += adj(row,k) @ support(k) with f32 accumulator."""
    if with_bias:
        def kernel(adj_ref, s_ref, b_ref, o_ref, acc_ref):
            @pl.when(pl.program_id(2) == 0)
            def _():
                acc_ref[...] = jnp.zeros_like(acc_ref)

            acc_ref[...] += jnp.dot(adj_ref[...].astype(cd),
                                    s_ref[0].astype(cd),
                                    preferred_element_type=jnp.float32)

            @pl.when(pl.program_id(2) == pl.num_programs(2) - 1)
            def _():
                o_ref[0] = (acc_ref[...]
                            + b_ref[...].astype(jnp.float32)).astype(o_ref.dtype)
    else:
        def kernel(adj_ref, s_ref, o_ref, acc_ref):
            @pl.when(pl.program_id(2) == 0)
            def _():
                acc_ref[...] = jnp.zeros_like(acc_ref)

            acc_ref[...] += jnp.dot(adj_ref[...].astype(cd),
                                    s_ref[0].astype(cd),
                                    preferred_element_type=jnp.float32)

            @pl.when(pl.program_id(2) == pl.num_programs(2) - 1)
            def _():
                o_ref[0] = acc_ref[...].astype(o_ref.dtype)
    return kernel


# --------------------------------------------------------------------------- #
# fused small-graph path
# --------------------------------------------------------------------------- #
def _fused_gcn(x, adj, weight, bias, *, cd, out_dtype, N8, F_in_p, F_out_p, vmem):
    B, N, F_in = x.shape
    F_out = weight.shape[1]

    # Zero-pad only where needed; x / adj keep their dtype (cast in-kernel).
    x_p = _pad_to(x, (B, N8, F_in_p))
    adj_p = _pad_to(adj, (N8, N8))
    w_p = _pad_to(weight.astype(cd), (F_in_p, F_out_p))   # small: pre-cast

    in_arrays = [x_p, adj_p, w_p]
    in_specs = [
        pl.BlockSpec((1, N8, F_in_p), lambda b: (b, 0, 0)),
        pl.BlockSpec((N8, N8), lambda b: (0, 0)),
        pl.BlockSpec((F_in_p, F_out_p), lambda b: (0, 0)),
    ]
    if bias is not None:
        bias_p = _pad_to(bias.reshape(1, F_out).astype(jnp.float32), (1, F_out_p))
        in_arrays.append(bias_p)
        in_specs.append(pl.BlockSpec((1, F_out_p), lambda b: (0, 0)))

    out_p = pl.pallas_call(
        _make_fused_kernel(cd, bias is not None),
        out_shape=jax.ShapeDtypeStruct((B, N8, F_out_p), out_dtype),
        grid_spec=pltpu.PrefetchScalarGridSpec(
            num_scalar_prefetch=0,
            grid=(B,),
            in_specs=in_specs,
            out_specs=pl.BlockSpec((1, N8, F_out_p), lambda b: (b, 0, 0)),
        ),
        compiler_params=pltpu.CompilerParams(
            dimension_semantics=("parallel",),
            vmem_limit_bytes=vmem,
        ),
    )(*in_arrays)
    return out_p[:, :N, :F_out]


# --------------------------------------------------------------------------- #
# two-pass large-graph path
# --------------------------------------------------------------------------- #
def _two_pass_gcn(x, adj, weight, bias, *, cd, out_dtype, budget, max_tile_k=None):
    B, N, F_in = x.shape
    F_out = weight.shape[1]
    cb = cd.itemsize
    ob = jnp.dtype(out_dtype).itemsize
    xb = jnp.dtype(x.dtype).itemsize
    ab = jnp.dtype(adj.dtype).itemsize

    # ----------------------------- tile selection ---------------------------
    F_out_p = _round_up(F_out, 128)

    # Pass-1 F_out tile: only tile when the weight panel is too big (review #9).
    tile_f = F_out_p
    while 2 * F_in * tile_f * cb > 0.35 * budget and tile_f > 128:
        tile_f = _round_up(tile_f // 2, 128)
    n_j = (F_out_p + tile_f - 1) // tile_f
    F_out_p = n_j * tile_f

    def _p1_bytes(tn):
        return (2 * tn * F_in * xb          # x block (double buffered, f32)
                + 2 * F_in * tile_f * cb    # weight block
                + 2 * tn * tile_f * cb)     # support out block

    # Pass-1 row tile: as large as the budget allows (review #4), 256-aligned.
    tile_n1 = 256
    for cand in (1024, 512, 256):
        if cand > _round_up(max(N, 256), 256):
            continue
        if _p1_bytes(cand) <= 0.7 * budget:
            tile_n1 = cand
            break
    N_p = _round_up(N, tile_n1)        # also a multiple of 256
    n_i1 = N_p // tile_n1

    # Pass-2 tiles: adj rows fixed at 256, N contraction k-tiled (review #1).
    tile_n2 = 256
    n_i2 = N_p // tile_n2

    def _p2_bytes(tk):
        return (2 * tile_n2 * tk * ab       # adj block (double buffered)
                + 2 * tk * F_out_p * cb     # support block (double buffered)
                + tile_n2 * F_out_p * 4     # f32 accumulator
                + 2 * tile_n2 * F_out_p * ob
                + 2 * F_out_p * 4)          # bias

    tile_k = None
    for cand in (N_p, 4096, 2048, 1024, 512, 256):
        if cand > N_p or N_p % cand:
            continue
        if max_tile_k is not None and cand > max_tile_k:
            continue
        if _p2_bytes(cand) <= 0.7 * budget:
            tile_k = cand
            break
    if tile_k is None:
        # TODO(synk): extremely wide F_out would also need F_out tiling here.
        tile_k = 256
    n_k = N_p // tile_k

    # Loop-order choice for pass 2 (review #5): only matters when n_k == 1,
    # where the grid-invariant operand along the middle axis is reused.
    if n_k == 1:
        rows_outer_bytes = N_p * N_p * ab + n_i2 * B * N_p * F_out_p * cb
        batch_outer_bytes = B * N_p * N_p * ab + B * N_p * F_out_p * cb
        rows_outer = rows_outer_bytes <= batch_outer_bytes
    else:
        rows_outer = True

    # ------------------------------ operand prep ----------------------------
    # x / adj stay in their original dtype (cast in-kernel); pad only axes the
    # tiling requires (review #3).  The small weight is pre-cast/padded.
    x_p = _pad_to(x, (B, N_p, F_in))
    adj_p = _pad_to(adj, (N_p, N_p))
    w_p = _pad_to(weight.astype(cd), (F_in, F_out_p))

    # ------------------------------- pass 1 ---------------------------------
    support = pl.pallas_call(
        _make_p1_kernel(cd),
        out_shape=jax.ShapeDtypeStruct((B, N_p, F_out_p), cd),
        grid_spec=pltpu.PrefetchScalarGridSpec(
            num_scalar_prefetch=0,
            grid=(n_i1, B, n_j),            # row tiles outermost (review #6)
            in_specs=[
                pl.BlockSpec((1, tile_n1, F_in), lambda i, b, j: (b, i, 0)),
                pl.BlockSpec((F_in, tile_f), lambda i, b, j: (0, j)),
            ],
            out_specs=pl.BlockSpec((1, tile_n1, tile_f),
                                   lambda i, b, j: (b, i, j)),
        ),
        compiler_params=pltpu.CompilerParams(
            dimension_semantics=("parallel", "parallel", "parallel"),
            vmem_limit_bytes=_vmem_limit(_p1_bytes(tile_n1), budget),
        ),
    )(x_p, w_p)

    # ------------------------------- pass 2 ---------------------------------
    if rows_outer:
        grid2 = (n_i2, B, n_k)
        adj_map = lambda i, b, k: (i, k)
        s_map = lambda i, b, k: (b, k, 0)
        o_map = lambda i, b, k: (b, i, 0)
        bias_map = lambda i, b, k: (0, 0)
    else:
        grid2 = (B, n_i2, n_k)
        adj_map = lambda b, i, k: (i, k)
        s_map = lambda b, i, k: (b, k, 0)
        o_map = lambda b, i, k: (b, i, 0)
        bias_map = lambda b, i, k: (0, 0)

    in_arrays = [adj_p, support]
    in_specs = [
        pl.BlockSpec((tile_n2, tile_k), adj_map),
        pl.BlockSpec((1, tile_k, F_out_p), s_map),
    ]
    if bias is not None:
        bias_p = _pad_to(bias.reshape(1, F_out).astype(jnp.float32), (1, F_out_p))
        in_arrays.append(bias_p)
        in_specs.append(pl.BlockSpec((1, F_out_p), bias_map))

    out_p = pl.pallas_call(
        _make_p2_kernel(cd, bias is not None),
        out_shape=jax.ShapeDtypeStruct((B, N_p, F_out_p), out_dtype),
        grid_spec=pltpu.PrefetchScalarGridSpec(
            num_scalar_prefetch=0,
            grid=grid2,
            in_specs=in_specs,
            out_specs=pl.BlockSpec((1, tile_n2, F_out_p), o_map),
            scratch_shapes=[pltpu.VMEM((tile_n2, F_out_p), jnp.float32)],
        ),
        compiler_params=pltpu.CompilerParams(
            dimension_semantics=("parallel", "parallel", "arbitrary"),
            vmem_limit_bytes=_vmem_limit(_p2_bytes(tile_k), budget),
        ),
    )(*in_arrays)
    return out_p[:, :N, :F_out]


# --------------------------------------------------------------------------- #
# public entry point
# --------------------------------------------------------------------------- #
def graph_convolution(x, adj, weight, bias=None, *,
                      compute_dtype=jnp.bfloat16, out_dtype=None,
                      force_two_pass=False, max_tile_k=None):
    """Pallas TPU GCN layer: adj @ (x @ weight) [+ bias].

    x:      (B, N, F_in)   (any float dtype; cast to compute_dtype in-kernel)
    adj:    (N, N)
    weight: (F_in, F_out)
    bias:   (1, 1, F_out) or None
    Returns (B, N, F_out) in out_dtype (default: x.dtype).

    `force_two_pass` / `max_tile_k` are testing knobs that force the k-tiled
    large-graph code path and cap the contraction tile.
    """
    B, N, F_in = x.shape
    F_in_w, F_out = weight.shape
    assert F_in_w == F_in, "weight rows must match input feature dim"
    assert adj.shape == (N, N), "adj must be (N, N)"
    out_dtype = jnp.dtype(out_dtype if out_dtype is not None else x.dtype)
    cd = jnp.dtype(compute_dtype)
    budget = _vmem_budget_bytes()

    # ---- fused single-kernel path for small graphs (review #2) ----
    N8 = _round_up(N, 8)
    F_in_p = _round_up(F_in, 128)
    F_out_p = _round_up(F_out, 128)
    xb = jnp.dtype(x.dtype).itemsize
    ab = jnp.dtype(adj.dtype).itemsize
    cb = cd.itemsize
    ob = out_dtype.itemsize
    fused_est = (2 * N8 * F_in_p * xb          # x row block (double buffered)
                 + 2 * N8 * N8 * ab            # adj (grid-invariant; counted 2x)
                 + 2 * F_in_p * F_out_p * cb   # weight (grid-invariant; 2x)
                 + 2 * N8 * F_out_p * ob       # out block (double buffered)
                 + 2 * N8 * F_out_p * 4        # f32 support / result temporaries
                 + 2 * F_out_p * 4)            # bias
    if not force_two_pass and fused_est <= 0.6 * budget:
        return _fused_gcn(x, adj, weight, bias, cd=cd, out_dtype=out_dtype,
                          N8=N8, F_in_p=F_in_p, F_out_p=F_out_p,
                          vmem=_vmem_limit(fused_est, budget))

    return _two_pass_gcn(x, adj, weight, bias, cd=cd, out_dtype=out_dtype,
                         budget=budget, max_tile_k=max_tile_k)


def init_gcn_params(key, in_features, out_features, use_bias=False):
    """Mirror GraphConvolution.reset_parameters: U(-stdv, stdv), stdv=1/sqrt(out)."""
    stdv = 1.0 / math.sqrt(out_features)
    k_w, k_b = jax.random.split(key)
    weight = jax.random.uniform(
        k_w, (in_features, out_features), jnp.float32, minval=-stdv, maxval=stdv)
    bias = None
    if use_bias:
        bias = jax.random.uniform(
            k_b, (1, 1, out_features), jnp.float32, minval=-stdv, maxval=stdv)
    return weight, bias


if __name__ == "__main__":
    key = jax.random.PRNGKey(0)
    k_x, k_adj, k_param, k_x2, k_adj2, k_param2 = jax.random.split(key, 6)

    # ----- small shapes (module scale): fused single-kernel path ------------
    B, N, F_in, F_out = 2, 8, 16, 32
    x = jax.random.normal(k_x, (B, N, F_in), jnp.float32)
    adj = jax.random.uniform(k_adj, (N, N), jnp.float32)

    # bias=False (module default), bf16 MXU compute
    weight, _ = init_gcn_params(k_param, F_in, F_out, use_bias=False)
    out = jax.block_until_ready(graph_convolution(x, adj, weight))
    ref = jnp.einsum("nm,bmf->bnf", adj, jnp.einsum("bni,io->bno", x, weight))
    assert out.shape == (B, N, F_out)
    assert jnp.allclose(out, ref, atol=5e-2, rtol=5e-2)

    # bias=True, bf16 MXU compute
    weight_b, bias_b = init_gcn_params(k_param, F_in, F_out, use_bias=True)
    out_b = jax.block_until_ready(graph_convolution(x, adj, weight_b, bias=bias_b))
    ref_b = (jnp.einsum("nm,bmf->bnf", adj,
                        jnp.einsum("bni,io->bno", x, weight_b)) + bias_b)
    assert out_b.shape == (B, N, F_out)
    assert jnp.allclose(out_b, ref_b, atol=5e-2, rtol=5e-2)

    # full-f32 compute path: tight tolerance sanity check
    out_f32 = jax.block_until_ready(
        graph_convolution(x, adj, weight_b, bias=bias_b,
                          compute_dtype=jnp.float32))
    assert jnp.allclose(out_f32, ref_b, atol=1e-4, rtol=1e-4)

    # ----- medium shapes: force the k-tiled two-pass path (f32 compute) -----
    B2, N2, F_in2, F_out2 = 2, 512, 256, 384
    x2 = jax.random.normal(k_x2, (B2, N2, F_in2), jnp.float32)
    adj2 = jax.random.uniform(k_adj2, (N2, N2), jnp.float32)
    weight2, bias2 = init_gcn_params(k_param2, F_in2, F_out2, use_bias=True)
    out2 = jax.block_until_ready(
        graph_convolution(x2, adj2, weight2, bias=bias2,
                          compute_dtype=jnp.float32,
                          force_two_pass=True, max_tile_k=256))
    x2_np = np.asarray(x2)
    adj2_np = np.asarray(adj2)
    ref2 = adj2_np @ (x2_np @ np.asarray(weight2)) + np.asarray(bias2)
    assert out2.shape == (B2, N2, F_out2)
    assert np.allclose(np.asarray(out2), ref2, atol=3e-2, rtol=1e-2)

    print("KERNEL_OK")
</pallas_src>

<mosaic_0001>
module attributes {stable_mosaic.version = 11 : i64} {
  func.func @kernel(%arg0: i32, %arg1: memref<1x8x128xf32, #tpu.memory_space<vmem>>, %arg2: memref<8x8xf32, #tpu.memory_space<vmem>>, %arg3: memref<128x128xbf16, #tpu.memory_space<vmem>>, %arg4: memref<1x8x128xf32, #tpu.memory_space<vmem>>) attributes {dimension_semantics = [#tpu.dimension_semantics<parallel>], iteration_bounds = array<i64: 2>, scalar_prefetch = 0 : i64, scratch_operands = 0 : i64, tpu.core_type = #tpu.core_type<tc>, window_params = [{transform_indices = @transform_0, window_bounds = array<i64: 1, 8, 128>}, {pipeline_mode = #tpu.pipeline_mode<synchronous>, transform_indices = @transform_1, window_bounds = array<i64: 8, 8>}, {pipeline_mode = #tpu.pipeline_mode<synchronous>, transform_indices = @transform_2, window_bounds = array<i64: 128, 128>}, {transform_indices = @transform_3, window_bounds = array<i64: 1, 8, 128>}]} {
    %c0 = arith.constant 0 : index
    %c0_0 = arith.constant 0 : index
    %c0_1 = arith.constant 0 : index
    %0 = vector.load %arg1[%c0, %c0_0, %c0_1] : memref<1x8x128xf32, #tpu.memory_space<vmem>>, vector<1x8x128xf32>
    %1 = vector.shape_cast %0 : vector<1x8x128xf32> to vector<8x128xf32>
    %2 = arith.truncf %1 : vector<8x128xf32> to vector<8x128xbf16>
    %c0_2 = arith.constant 0 : index
    %c0_3 = arith.constant 0 : index
    %3 = vector.load %arg3[%c0_2, %c0_3] : memref<128x128xbf16, #tpu.memory_space<vmem>>, vector<128x128xbf16>
    %cst = arith.constant dense<0.000000e+00> : vector<8x128xf32>
    %4 = tpu.matmul %2, %3, %cst {dimension_numbers = #tpu.dot_dimension_numbers<[1], [0], [0], [1], [0, 0, 1, 1], [], []>} : vector<8x128xbf16>, vector<128x128xbf16>, vector<8x128xf32> -> vector<8x128xf32>
    %c0_4 = arith.constant 0 : index
    %c0_5 = arith.constant 0 : index
    %5 = vector.load %arg2[%c0_4, %c0_5] : memref<8x8xf32, #tpu.memory_space<vmem>>, vector<8x8xf32>
    %6 = arith.truncf %5 : vector<8x8xf32> to vector<8x8xbf16>
    %7 = arith.truncf %4 : vector<8x128xf32> to vector<8x128xbf16>
    %cst_6 = arith.constant dense<0.000000e+00> : vector<8x128xf32>
    %8 = tpu.matmul %6, %7, %cst_6 {dimension_numbers = #tpu.dot_dimension_numbers<[1], [0], [0], [1], [0, 0, 1, 1], [], []>} : vector<8x8xbf16>, vector<8x128xbf16>, vector<8x128xf32> -> vector<8x128xf32>
    %c0_7 = arith.constant 0 : index
    %c0_8 = arith.constant 0 : index
    %c0_9 = arith.constant 0 : index
    %9 = vector.load %arg4[%c0_7, %c0_8, %c0_9] : memref<1x8x128xf32, #tpu.memory_space<vmem>>, vector<1x8x128xf32>
    %10 = vector.shape_cast %9 : vector<1x8x128xf32> to vector<8x128xf32>
    %11 = vector.shape_cast %8 : vector<8x128xf32> to vector<1x8x128xf32>
    tpu.vector_store %arg4[%c0_7, %c0_8, %c0_9], %11 {strides = array<i32>} : memref<1x8x128xf32, #tpu.memory_space<vmem>>, vector<1x8x128xf32>,
    return
  }
  func.func @transform_0(%arg0: i32) -> (i32, i32, i32) {
    %c0_i32 = arith.constant 0 : i32
    %c0_i32_0 = arith.constant 0 : i32
    %c0_i32_1 = arith.constant 0 : i32
    return %arg0, %c0_i32, %c0_i32_0 : i32, i32, i32
  }
  func.func @transform_1(%arg0: i32) -> (i32, i32) {
    %c0_i32 = arith.constant 0 : i32
    %c0_i32_0 = arith.constant 0 : i32
    %c0_i32_1 = arith.constant 0 : i32
    return %c0_i32, %c0_i32_0 : i32, i32
  }
  func.func @transform_2(%arg0: i32) -> (i32, i32) {
    %c0_i32 = arith.constant 0 : i32
    %c0_i32_0 = arith.constant 0 : i32
    %c0_i32_1 = arith.constant 0 : i32
    return %c0_i32, %c0_i32_0 : i32, i32
  }
  func.func @transform_3(%arg0: i32) -> (i32, i32, i32) {
    %c0_i32 = arith.constant 0 : i32
    %c0_i32_0 = arith.constant 0 : i32
    %c0_i32_1 = arith.constant 0 : i32
    return %arg0, %c0_i32, %c0_i32_0 : i32, i32, i32
  }
}

</mosaic_0001>

<llo_original>
// kernel: tpu_custom_call.1
$region0: #{tpu_custom_call.1}
  #allocation0 [shape = 'u32[]', space=smem, size = 0x4, offset = 0x4, fixed_abs, tag = 'smem constant byte address 0x4 - core index']
  #allocation1 [shape = 'u32[72,128]{1,0:T(1,128)}', space=vmem, size = 0x9000, scoped, tag = 'internal scratch']
  %s0 = inlined_call_operand.hbm [shape: f32[2,8,128], index: 0, kind: input, shape index: {}]
  %s1 = inlined_call_operand.hbm [shape: f32[8,8], index: 1, kind: input, shape index: {}]
  %s2 = inlined_call_operand.hbm [shape: bf16[128,128], index: 2, kind: input, shape index: {}]
  %s3 = inlined_call_operand.hbm [shape: f32[2,8,128], index: 3, kind: output, shape index: {}]
  %s4 = sld [smem:[#allocation0]]
  $region57: #{tpu_custom_call.1} parent=0
    _
  %s6 = ssub.s32 1, %s4
  %s7 = scalar_select 0, %s6, %s4
  $region1: #{tpu_custom_call.1} parent=0
    #allocation2 [shape = 'u8[8192]{0}', space=vmem, size = 0x2000, scoped, tag = 'input window, operand 0']
    #allocation3 [shape = 's32[2]{0}', space=sflag, size = 0x8, scoped, tag = 'scoped memory for tpu_custom_call.1']
    #allocation4 [shape = 's32[2]{0}', space=sflag, size = 0x8, scoped, tag = 'scoped memory for tpu_custom_call.1']
    #allocation5 [shape = 'u8[4096]{0}', space=vmem, size = 0x1000, scoped, tag = 'input window, operand 1, single buffered']
    #allocation6 [shape = 's32[1]{0}', space=sflag, size = 0x4, scoped, tag = 'scoped memory for tpu_custom_call.1']
    #allocation7 [shape = 'u8[32768]{0}', space=vmem, size = 0x8000, scoped, tag = 'input window, operand 2, single buffered']
    #allocation8 [shape = 'u8[8192]{0}', space=vmem, size = 0x2000, scoped, tag = 'output window, operand 0']
    %8 = vsyncpa [#allocation3], 0
    %s9 = scalar_lea.sflag [#allocation3], 1
    %10 = vsyncpa %s9, 0
    %11 = vsyncpa [#allocation6], 0
    %12 = vsyncpa [#allocation4], 0
    %s13 = scalar_lea.sflag [#allocation4], 1
    %14 = vsyncpa %s13, 0
    loop: start=0, step=1, limit=4
    $region2: #{tpu_custom_call.1} parent=1 // loop_pre_header
      _
    $region3: #{tpu_custom_call.1} parent=1 // loop_header
      %s16 = sphi 0, %s20
      %p17 = scmp.ge.s32.totalorder %s16, 4
      %s26 = sphi 0, %s28
      %s29 = sphi 0, %s26
      %s30 = sphi 0, %s29
      %s46 = sphi 0, %s30
      %s50 = sphi 0, %s50
      %s52 = sphi 0, %s50
      %s53 = sphi 0, %s52
      %s67 = sphi 0, %s53
      %s71 = sphi 0, %s71
      %s73 = sphi 0, %s71
      %s74 = sphi 0, %s73
      %s88 = sphi 0, %s74
      %s94 = sphi 0, %s96
      %s97 = sphi 0, %s94
      %s98 = sphi 0, %s97
      %s114 = sphi 0, %s98
    $region4: #{tpu_custom_call.1} parent=1 // loop_header_branch
      %19 = sbr.rel (%p17) target = $region8
    $region5: #{tpu_custom_call.1} parent=1 // loop_body
      %s21 = ssub.s32 %s16, 1
      %s22 = ssub.s32 %s16, 2
      %s23 = sadd.s32 %s16, 1
      %s24 = ssub.s32 %s16, %s23
      %p25 = scmp.eq.s32.totalorder %s24, 0
      %s27 = sadd.s32 %s26, 1
      %s28 = scalar_select %p25, %s26, %s27
      %p31 = pneg %p25
      %p32 = scmp.eq.s32.totalorder %s16, 1
      %p33 = por %p31, %p32
      %p34 = scmp.ne.s32.totalorder %s26, %s29
      %p35 = scmp.eq.s32.totalorder %s16, 0
      %p36 = por %p34, %p35
      %p37 = scmp.ne.s32.totalorder %s26, %s29
      %p38 = scmp.eq.s32.totalorder %s21, 1
      %p39 = por %p37, %p38
      %p40 = scmp.ne.s32.totalorder %s29, %s30
      %p41 = scmp.eq.s32.totalorder %s21, 0
      %p42 = por %p40, %p41
      %p43 = scmp.ne.s32.totalorder %s29, %s30
      %p44 = scmp.eq.s32.totalorder %s22, 1
      %p45 = por %p43, %p44
      %p47 = scmp.ne.s32.totalorder %s30, %s46
      %p48 = scmp.eq.s32.totalorder %s22, 0
      %p49 = por %p47, %p48
      %s51 = sadd.s32 %s50, 1
      %p54 = scmp.eq.s32.totalorder %s16, 1
      %p55 = scmp.ne.s32.totalorder %s50, %s52
      %p56 = scmp.eq.s32.totalorder %s16, 0
      %p57 = por %p55, %p56
      %p58 = scmp.ne.s32.totalorder %s50, %s52
      %p59 = scmp.eq.s32.totalorder %s21, 1
      %p60 = por %p58, %p59
      %p61 = scmp.ne.s32.totalorder %s52, %s53
      %p62 = scmp.eq.s32.totalorder %s21, 0
      %p63 = por %p61, %p62
      %p64 = scmp.ne.s32.totalorder %s52, %s53
      %p65 = scmp.eq.s32.totalorder %s22, 1
      %p66 = por %p64, %p65
      %p68 = scmp.ne.s32.totalorder %s53, %s67
      %p69 = scmp.eq.s32.totalorder %s22, 0
      %p70 = por %p68, %p69
      %s72 = sadd.s32 %s71, 1
      %p75 = scmp.eq.s32.totalorder %s16, 1
      %p76 = scmp.ne.s32.totalorder %s71, %s73
      %p77 = scmp.eq.s32.totalorder %s16, 0
      %p78 = por %p76, %p77
      %p79 = scmp.ne.s32.totalorder %s71, %s73
      %p80 = scmp.eq.s32.totalorder %s21, 1
      %p81 = por %p79, %p80
      %p82 = scmp.ne.s32.totalorder %s73, %s74
      %p83 = scmp.eq.s32.totalorder %s21, 0
      %p84 = por %p82, %p83
      %p85 = scmp.ne.s32.totalorder %s73, %s74
      %p86 = scmp.eq.s32.totalorder %s22, 1
      %p87 = por %p85, %p86
      %p89 = scmp.ne.s32.totalorder %s74, %s88
      %p90 = scmp.eq.s32.totalorder %s22, 0
      %p91 = por %p89, %p90
      %s92 = ssub.s32 %s16, %s23
      %p93 = scmp.eq.s32.totalorder %s92, 0
      %s95 = sadd.s32 %s94, 1
      %s96 = scalar_select %p93, %s94, %s95
      %p99 = pneg %p93
      %p100 = scmp.eq.s32.totalorder %s16, 1
      %p101 = por %p99, %p100
      %p102 = scmp.ne.s32.totalorder %s94, %s97
      %p103 = scmp.eq.s32.totalorder %s16, 0
      %p104 = por %p102, %p103
      %p105 = scmp.ne.s32.totalorder %s94, %s97
      %p106 = scmp.eq.s32.totalorder %s21, 1
      %p107 = por %p105, %p106
      %p108 = scmp.ne.s32.totalorder %s97, %s98
      %p109 = scmp.eq.s32.totalorder %s21, 0
      %p110 = por %p108, %p109
      %p111 = scmp.ne.s32.totalorder %s97, %s98
      %p112 = scmp.eq.s32.totalorder %s22, 1
      %p113 = por %p111, %p112
      %p115 = scmp.ne.s32.totalorder %s98, %s114
      %p116 = scmp.eq.s32.totalorder %s22, 0
      %p117 = por %p115, %p116
      %p118 = scmp.le.s32.totalorder 1, %s16
      %p119 = scmp.lt.s32.totalorder %s16, 3
      %p120 = pnand %p118, %p119
      %p121 = pneg %p120
      // Predicated region
      $region9: #{tpu_custom_call.1} parent=5 // pred_check
        _
      $region10: #{tpu_custom_call.1} parent=5 // pred_check_branch
        %123 = sbr.rel (%p120) target = $region12
      $region11: #{tpu_custom_call.1} parent=5 // pred_region
        %s124 = ssub.s32 %s16, 1
        // Predicated region
        $region13: #{tpu_custom_call.1} parent=11 // pred_check
          %p125 = pneg %p63
        $region14: #{tpu_custom_call.1} parent=11 // pred_check_branch
          %127 = sbr.rel (%p125) target = $region16
        $region15: #{tpu_custom_call.1} parent=11 // pred_region
          %129 = vsyncadd [#allocation6], 0
          %s131 = sshll.u32 %s1, 4
          %s132 = int_to_ptr.hbm [resolvable:$true] %s131
          %s133 = sshll.u32 [#allocation5], 4
          %s134 = int_to_ptr.vmem [resolvable:$true] %s133
          %136 = dma.hbm_to_vmem [thread:$0]  %s132, 128, %s134, [#allocation6]
        $region16: #{tpu_custom_call.1} parent=11 // pred_fallthru
          _
        // Predicated region
        $region17: #{tpu_custom_call.1} parent=11 // pred_check
          %p137 = pneg %p84
        $region18: #{tpu_custom_call.1} parent=11 // pred_check_branch
          %139 = sbr.rel (%p137) target = $region20
        $region19: #{tpu_custom_call.1} parent=11 // pred_region
          %141 = vsyncadd [#allocation6], 0
          %s142 = sshll.u32 %s2, 4
          %s143 = int_to_ptr.hbm [resolvable:$true] %s142
          %s144 = sshll.u32 [#allocation7], 4
          %s145 = int_to_ptr.vmem [resolvable:$true] %s144
          %150 = dma.hbm_to_vmem [thread:$0]  %s143, 1024, %s145, [#allocation6], 64, 64, 4
        $region20: #{tpu_custom_call.1} parent=11 // pred_fallthru
          _
      $region12: #{tpu_custom_call.1} parent=5 // pred_fallthru
        _
      %p151 = scmp.lt.s32.totalorder %s16, 2
      // Predicated region
      $region21: #{tpu_custom_call.1} parent=5 // pred_check
        %p152 = pneg %p151
      $region22: #{tpu_custom_call.1} parent=5 // pred_check_branch
        %154 = sbr.rel (%p152) target = $region24
      $region23: #{tpu_custom_call.1} parent=5 // pred_region
        // Predicated region
        $region25: #{tpu_custom_call.1} parent=23 // pred_check
          %p155 = pneg %p36
        $region26: #{tpu_custom_call.1} parent=23 // pred_check_branch
          %157 = sbr.rel (%p155) target = $region28
        $region27: #{tpu_custom_call.1} parent=23 // pred_region
          %s158 = sand.u32 %s26, 1
          %s159 = scalar_lea.sflag [#allocation3], %s158
          %s160 = sand.u32 %s26, 1
          %s161 = smul.addr %s160, 8
          %s162 = scalar_lea.vmem [#allocation2], %s161
          %164 = vsyncadd %s159, 0
          %s165 = smul.addr %s16, 8
          %s166 = scalar_lea.hbm %s0, %s165
          %s168 = sshll.u32 %s166, 4
          %s169 = int_to_ptr.hbm [resolvable:$true] %s168
          %s170 = sshll.u32 %s162, 4
          %s171 = int_to_ptr.vmem [resolvable:$true] %s170
          %173 = dma.hbm_to_vmem [thread:$0]  %s169, 128, %s171, %s159
        $region28: #{tpu_custom_call.1} parent=23 // pred_fallthru
          _
      $region24: #{tpu_custom_call.1} parent=5 // pred_fallthru
        _
      %p174 = scmp.le.s32.totalorder 1, %s16
      %p175 = scmp.lt.s32.totalorder %s16, 3
      %p176 = pnand %p174, %p175
      %p177 = pneg %p176
      // Predicated region
      $region29: #{tpu_custom_call.1} parent=5 // pred_check
        _
      $region30: #{tpu_custom_call.1} parent=5 // pred_check_branch
        %179 = sbr.rel (%p176) target = $region32
      $region31: #{tpu_custom_call.1} parent=5 // pred_region
        %s180 = ssub.s32 %s16, 1
        %s181 = sand.u32 %s29, 1
        %s182 = scalar_lea.sflag [#allocation3], %s181
        %s183 = sand.u32 %s29, 1
        %s184 = smul.addr %s183, 8
        %s185 = scalar_lea.vmem [#allocation2], %s184
        // Predicated region
        $region33: #{tpu_custom_call.1} parent=31 // pred_check
          %p186 = pneg %p42
        $region34: #{tpu_custom_call.1} parent=31 // pred_check_branch
          %188 = sbr.rel (%p186) target = $region36
        $region35: #{tpu_custom_call.1} parent=31 // pred_region
          %190 = dma.done %s182, 128
        $region36: #{tpu_custom_call.1} parent=31 // pred_fallthru
          _
        // Predicated region
        $region37: #{tpu_custom_call.1} parent=31 // pred_check
          %p191 = pneg %p63
        $region38: #{tpu_custom_call.1} parent=31 // pred_check_branch
          %193 = sbr.rel (%p191) target = $region40
        $region39: #{tpu_custom_call.1} parent=31 // pred_region
          %195 = dma.done [#allocation6], 128
        $region40: #{tpu_custom_call.1} parent=31 // pred_fallthru
          _
        // Predicated region
        $region41: #{tpu_custom_call.1} parent=31 // pred_check
          %p196 = pneg %p84
        $region42: #{tpu_custom_call.1} parent=31 // pred_check_branch
          %198 = sbr.rel (%p196) target = $region44
        $region43: #{tpu_custom_call.1} parent=31 // pred_region
          %200 = dma.done [#allocation6], 1024
        $region44: #{tpu_custom_call.1} parent=31 // pred_fallthru
          _
        %s201 = sand.u32 %s29, 1
        %s202 = scalar_lea.sflag [#allocation3], %s201
        %s203 = sand.u32 %s29, 1
        %s204 = smul.addr %s203, 8
        %s205 = scalar_lea.vmem [#allocation2], %s204
        %p206 = pneg %p42
        %p207 = pneg %p39
        %p208 = pneg %p63
        %p209 = pneg %p60
        %p210 = pneg %p84
        %p211 = pneg %p81
        %p212 = pneg %p110
        %p213 = pneg %p107
        %s214 = sand.u32 %s97, 1
        %s215 = scalar_lea.sflag [#allocation4], %s214
        %s216 = sand.u32 %s97, 1
        %s217 = smul.addr %s216, 8
        %s218 = scalar_lea.vmem [#allocation8], %s217
        %v220 = vld [vmem:[%s185] sm:$0xff]
        %v221 = vpack.c.bf16 %v220, %v220
        %v222 = vld [vmem:[#allocation7] sm:$0xf]
        %v223 = vld [vmem:[#allocation7 + $0x4] sm:$0xf]
        %v224 = vld [vmem:[#allocation7 + $0x8] sm:$0xf]
        %v225 = vld [vmem:[#allocation7 + $0xc] sm:$0xf]
        %v226 = vld [vmem:[#allocation7 + $0x10] sm:$0xf]
        %v227 = vld [vmem:[#allocation7 + $0x14] sm:$0xf]
        %v228 = vld [vmem:[#allocation7 + $0x18] sm:$0xf]
        %v229 = vld [vmem:[#allocation7 + $0x1c] sm:$0xf]
        %v230 = vld [vmem:[#allocation7 + $0x20] sm:$0xf]
        %v231 = vld [vmem:[#allocation7 + $0x24] sm:$0xf]
        %v232 = vld [vmem:[#allocation7 + $0x28] sm:$0xf]
        %v233 = vld [vmem:[#allocation7 + $0x2c] sm:$0xf]
        %v234 = vld [vmem:[#allocation7 + $0x30] sm:$0xf]
        %v235 = vld [vmem:[#allocation7 + $0x34] sm:$0xf]
        %v236 = vld [vmem:[#allocation7 + $0x38] sm:$0xf]
        %v237 = vld [vmem:[#allocation7 + $0x3c] sm:$0xf]
        %v254 = vunpack.c.l.b16 %v222
        %v255 = vunpack.c.l.b16 %v223
        %v256 = vunpack.c.l.b16 %v224
        %v257 = vunpack.c.l.b16 %v225
        %v258 = vunpack.c.l.b16 %v226
        %v259 = vunpack.c.l.b16 %v227
        %v260 = vunpack.c.l.b16 %v228
        %v261 = vunpack.c.l.b16 %v229
        %v262 = vunpack.c.l.b16 %v230
        %v263 = vunpack.c.l.b16 %v231
        %v264 = vunpack.c.l.b16 %v232
        %v265 = vunpack.c.l.b16 %v233
        %v266 = vunpack.c.l.b16 %v234
        %v267 = vunpack.c.l.b16 %v235
        %v268 = vunpack.c.l.b16 %v236
        %v269 = vunpack.c.l.b16 %v237
        %v270 = vpack.c.b16 %v255, %v254
        %v271 = vpack.c.b16 %v257, %v256
        %v272 = vpack.c.b16 %v259, %v258
        %v273 = vpack.c.b16 %v261, %v260
        %v274 = vpack.c.b16 %v263, %v262
        %v275 = vpack.c.b16 %v265, %v264
        %v276 = vpack.c.b16 %v267, %v266
        %v277 = vpack.c.b16 %v269, %v268
        %286 = vmatpush.bf16.msra.mxu0 %v277
        %287 = vmatpush.bf16.msra.mxu0 %v276
        %288 = vmatpush.bf16.msra.mxu0 %v275
        %289 = vmatpush.bf16.msra.mxu0 %v274
        %290 = vmatpush.bf16.msra.mxu0 %v273
        %291 = vmatpush.bf16.msra.mxu0 %v272
        %292 = vmatpush.bf16.msra.mxu0 %v271
        %293 = vmatpush.bf16.msra.mxu0 %v270
        %294 = vmatmul.bf16.gmra.mxu0 %v221
        %v295 = vpop.f32.mrf.mxu0
        %v296 = vadd.f32 0.0, %v295
        %v297 = vpop.f32.mrf.mxu0
        %298 = vdwg.mxu0
        %v299 = vld [vmem:[#allocation5] sm:$0xff]
        %v300 = vpack.c.bf16 %v299, %v299
        %v301 = vpack.c.bf16 %v296, %v296
        %vm302 = vcmask 64512
        %v304 = vsel %vm302, %v300, 0
        %vm306 = vcmask 1043456
        %v308 = vsel %vm306, %v301, 0
        %310 = vmatpush.bf16.msra.mxu0 0
        %311 = vmatpush.bf16.msra.mxu0 0
        %312 = vmatpush.bf16.msra.mxu0 0
        %313 = vmatpush.bf16.msra.mxu0 0
        %314 = vmatpush.bf16.msra.mxu0 0
        %315 = vmatpush.bf16.msra.mxu0 0
        %316 = vmatpush.bf16.msra.mxu0 0
        %317 = vmatpush.bf16.msra.mxu0 %v308
        %318 = vmatmul.bf16.gmra.mxu0 %v304
        %v319 = vpop.f32.mrf.mxu0
        %v320 = vadd.f32 0.0, %v319
        %v321 = vpop.f32.mrf.mxu0
        %322 = vdwg.mxu0
        %323 = vst [vmem:[%s218] sm:$0xff] %v320
        %s324 = sand.u32 %s97, 1
        %s325 = scalar_lea.sflag [#allocation4], %s324
        %s326 = sand.u32 %s97, 1
        %s327 = smul.addr %s326, 8
        %s328 = scalar_lea.vmem [#allocation8], %s327
        // Predicated region
        $region45: #{tpu_custom_call.1} parent=31 // pred_check
          %p329 = pneg %p107
        $region46: #{tpu_custom_call.1} parent=31 // pred_check_branch
          %331 = sbr.rel (%p329) target = $region48
        $region47: #{tpu_custom_call.1} parent=31 // pred_region
          %333 = vsyncadd %s325, 0
          %s334 = smul.addr %s21, 8
          %s335 = scalar_lea.hbm %s3, %s334
          %s337 = sshll.u32 %s328, 4
          %s338 = int_to_ptr.vmem [resolvable:$true] %s337
          %s339 = sshll.u32 %s335, 4
          %s340 = int_to_ptr.hbm [resolvable:$true] %s339
          %342 = dma.vmem_to_hbm [thread:$0]  %s338, 128, %s340, %s325
        $region48: #{tpu_custom_call.1} parent=31 // pred_fallthru
          _
      $region32: #{tpu_custom_call.1} parent=5 // pred_fallthru
        _
      %p343 = scmp.le.s32.totalorder 2, %s16
      // Predicated region
      $region49: #{tpu_custom_call.1} parent=5 // pred_check
        %p344 = pneg %p343
      $region50: #{tpu_custom_call.1} parent=5 // pred_check_branch
        %346 = sbr.rel (%p344) target = $region52
      $region51: #{tpu_custom_call.1} parent=5 // pred_region
        %s347 = ssub.s32 %s16, 2
        // Predicated region
        $region53: #{tpu_custom_call.1} parent=51 // pred_check
          %p348 = pneg %p113
        $region54: #{tpu_custom_call.1} parent=51 // pred_check_branch
          %350 = sbr.rel (%p348) target = $region56
        $region55: #{tpu_custom_call.1} parent=51 // pred_region
          %s351 = sand.u32 %s98, 1
          %s352 = scalar_lea.sflag [#allocation4], %s351
          %s353 = sand.u32 %s98, 1
          %s354 = smul.addr %s353, 8
          %s355 = scalar_lea.vmem [#allocation8], %s354
          %357 = dma.done %s352, 128
        $region56: #{tpu_custom_call.1} parent=51 // pred_fallthru
          _
      $region52: #{tpu_custom_call.1} parent=5 // pred_fallthru
        _
    $region6: #{tpu_custom_call.1} parent=1 // loop_footer
      %s20 = sadd.s32 1, %s16
    $region7: #{tpu_custom_call.1} parent=1 // loop_footer_branch
      %15 = sbr.rel target = $region3
    $region8: #{tpu_custom_call.1} parent=1 // loop_exit
      _
    %358 = vsyncpa [#allocation3], 1
    %s359 = scalar_lea.sflag [#allocation3], 1
    %360 = vsyncpa %s359, 1
    %361 = vsyncpa [#allocation6], 1
    %362 = vsyncpa [#allocation4], 1
    %s363 = scalar_lea.sflag [#allocation4], 1
    %364 = vsyncpa %s363, 1

</llo_original>
